<compile_context>
chip_gen: v7x
topology: tpu7x:2x2x1
jax: 0.10.0
libtpu: 0.0.40
codegen_flags: <defaults>
</compile_context>

<pallas_src>
import functools

import jax
import jax.numpy as jnp
from jax.experimental import pallas as pl
from jax.experimental.pallas import tpu as pltpu


def rnn_step_kernel(x_ref, h0_ref, wx_ref, wh_ref, b_ref, out_ref, h_scratch,
                    *, hidden_size, output_size):
    """One timestep of the RNN cell; grid axis 0 iterates the sequence.

    x_ref:  (1, Bp, I)   current timestep's input tile
    h0_ref: (Bp, P)      initial hidden (lanes [H:] zero), resident
    wx_ref: (I, P)       fused x-weights  (cols [0:H] hidden, [H:H+O] logits)
    wh_ref: (P, P)       fused h-weights  (rows [H:] zero)
    b_ref:  (1, P)       fused bias
    out_ref:(1, Bp, P)   per-step fused output (hidden | log-probs | 0-pad)
    h_scratch: (Bp, P)   recurrent carry, persists across grid steps
    """
    t = pl.program_id(0)

    @pl.when(t == 0)
    def _():
        h_scratch[...] = h0_ref[...]

    # Two lane-aligned MXU dots with f32 accumulation; no in-kernel concat.
    fused = (jnp.dot(x_ref[0], wx_ref[...], preferred_element_type=jnp.float32)
             + jnp.dot(h_scratch[...], wh_ref[...],
                       preferred_element_type=jnp.float32)
             + b_ref[...])

    # Masked, numerically stable LogSoftmax over the logit lanes only.
    col = jax.lax.broadcasted_iota(jnp.int32, fused.shape, 1)
    is_logit = jnp.logical_and(col >= hidden_size,
                               col < hidden_size + output_size)

    masked = jnp.where(is_logit, fused, -jnp.inf)
    m = jnp.max(masked, axis=1, keepdims=True)
    p = jnp.exp(masked - m)                      # non-logit lanes -> exp(-inf)=0
    lse = m + jnp.log(jnp.sum(p, axis=1, keepdims=True))

    # Logit lanes become log-probs; hidden (and padding) lanes pass through.
    result = jnp.where(is_logit, fused - lse, fused)
    out_ref[0] = result
    # Carry the full fused row as the next hidden: lanes [H:] are killed by the
    # zero rows of wh, so no lane slicing is needed.
    h_scratch[...] = result


def prepare_rnn_params(w_i2h, b_i2h, w_i2o, b_i2o, input_size):
    """One-time weight prep (run once per model, NOT per call).

    w_i2h: (H, I+H), w_i2o: (O, I+H)  (PyTorch nn.Linear layout).
    Returns a dict with padded/fused weights and the static sizes.
    """
    w_i2h = jnp.asarray(w_i2h, jnp.float32)
    w_i2o = jnp.asarray(w_i2o, jnp.float32)
    H = w_i2h.shape[0]
    O = w_i2o.shape[0]
    I = input_size
    P = max(128, pl.cdiv(H + O, 128) * 128)      # lane-dense fused width

    w_cat = jnp.concatenate([w_i2h, w_i2o], axis=0)               # (H+O, I+H)
    wx = jnp.pad(w_cat[:, :I].T, ((0, 0), (0, P - (H + O))))      # (I, P)
    # wh padded to (P, P): rows [0:H] real, rows [H:] zero so the padded /
    # log-prob lanes of the carried state never contribute.
    wh = jnp.pad(w_cat[:, I:].T, ((0, P - H), (0, P - (H + O))))  # (P, P)
    b = jnp.concatenate([jnp.asarray(b_i2h, jnp.float32),
                         jnp.asarray(b_i2o, jnp.float32)])
    b = jnp.pad(b, (0, P - (H + O))).reshape(1, P)                # (1, P)
    return {"wx": wx, "wh": wh, "b": b, "I": I, "H": H, "O": O, "P": P}


def rnn_sequence(xs, h0, params):
    """Run the RNN cell over a sequence in ONE pallas_call.

    xs: (T, B, I), h0: (B, H).
    Returns (log_probs (T, B, O), final hidden (B, H)).
    """
    wx, wh, b = params["wx"], params["wh"], params["b"]
    I, H, O, P = params["I"], params["H"], params["O"], params["P"]

    xs = jnp.asarray(xs, jnp.float32)
    h0 = jnp.asarray(h0, jnp.float32)
    T, B, _ = xs.shape
    Bp = max(8, pl.cdiv(B, 8) * 8)               # f32 sublane tile

    xs_p = jnp.pad(xs, ((0, 0), (0, Bp - B), (0, 0)))      # (T, Bp, I)
    h0_p = jnp.pad(h0, ((0, Bp - B), (0, P - H)))          # (Bp, P)

    cost = pl.CostEstimate(
        flops=T * (2 * Bp * I * P + 2 * Bp * P * P + 5 * Bp * P),
        transcendentals=T * (Bp * P + Bp),
        bytes_accessed=4 * (xs_p.size + h0_p.size + wx.size + wh.size + b.size
                            + T * Bp * P),
    )

    fused = pl.pallas_call(
        functools.partial(rnn_step_kernel, hidden_size=H, output_size=O),
        out_shape=jax.ShapeDtypeStruct((T, Bp, P), jnp.float32),
        grid=(T,),
        in_specs=[
            pl.BlockSpec((1, Bp, I), lambda t: (t, 0, 0)),   # x: one step/tile
            pl.BlockSpec((Bp, P), lambda t: (0, 0)),         # h0: resident
            pl.BlockSpec((I, P), lambda t: (0, 0)),          # wx: resident
            pl.BlockSpec((P, P), lambda t: (0, 0)),          # wh: resident
            pl.BlockSpec((1, P), lambda t: (0, 0)),          # bias: resident
        ],
        out_specs=pl.BlockSpec((1, Bp, P), lambda t: (t, 0, 0)),
        scratch_shapes=[pltpu.VMEM((Bp, P), jnp.float32)],   # recurrent carry
        compiler_params=pltpu.CompilerParams(
            dimension_semantics=("arbitrary",),              # true recurrence
            vmem_limit_bytes=32 * 1024 * 1024,               # safe on v5e/v6e/v7x
        ),
        cost_estimate=cost,
    )(xs_p, h0_p, wx, wh, b)

    log_probs = fused[:, :B, H:H + O]
    hidden = fused[T - 1, :B, :H]
    return log_probs, hidden


def rnn_forward(x, h, params):
    """Single-step forward with the exact semantics of the PyTorch module:
    returns (log_probs (B, O), hidden (B, H))."""
    log_probs, hidden = rnn_sequence(x[None], h, params)
    return log_probs[0], hidden


# ----------------------------- pure-JAX reference ---------------------------
def rnn_cell_ref(x, h, w_i2h, b_i2h, w_i2o, b_i2o):
    combined = jnp.concatenate([x, h], axis=1)
    hidden = combined @ w_i2h.T + b_i2h
    logits = combined @ w_i2o.T + b_i2o
    return jax.nn.log_softmax(logits, axis=1), hidden


def rnn_sequence_ref(xs, h0, w_i2h, b_i2h, w_i2o, b_i2o):
    def step(h, x):
        out, h_new = rnn_cell_ref(x, h, w_i2h, b_i2h, w_i2o, b_i2o)
        return h_new, out
    h_final, outs = jax.lax.scan(step, h0, xs)
    return outs, h_final


if __name__ == "__main__":
    batch = 2
    input_size = 16
    hidden_size = 32
    output_size = 8
    seq_len = 8

    key = jax.random.PRNGKey(0)
    k_x, k_h, k_w1, k_b1, k_w2, k_b2 = jax.random.split(key, 6)

    fan_in = input_size + hidden_size
    bound = 1.0 / jnp.sqrt(fan_in)
    w_i2h = jax.random.uniform(k_w1, (hidden_size, fan_in), jnp.float32, -bound, bound)
    b_i2h = jax.random.uniform(k_b1, (hidden_size,), jnp.float32, -bound, bound)
    w_i2o = jax.random.uniform(k_w2, (output_size, fan_in), jnp.float32, -bound, bound)
    b_i2o = jax.random.uniform(k_b2, (output_size,), jnp.float32, -bound, bound)

    xs = jax.random.normal(k_x, (seq_len, batch, input_size), jnp.float32)
    h0 = jax.random.normal(k_h, (batch, hidden_size), jnp.float32)

    # Weight prep happens exactly once.
    params = prepare_rnn_params(w_i2h, b_i2h, w_i2o, b_i2o, input_size)

    # --- single-step (module semantics) ---
    out1, hid1 = rnn_forward(xs[0], h0, params)
    out1, hid1 = jax.block_until_ready((out1, hid1))
    out1_ref, hid1_ref = rnn_cell_ref(xs[0], h0, w_i2h, b_i2h, w_i2o, b_i2o)
    assert out1.shape == (batch, output_size) and hid1.shape == (batch, hidden_size)
    assert jnp.allclose(out1, out1_ref, atol=1e-5, rtol=1e-5)
    assert jnp.allclose(hid1, hid1_ref, atol=1e-5, rtol=1e-5)

    # --- fused sequence (one pallas_call for all timesteps) ---
    outs, hid = rnn_sequence(xs, h0, params)
    outs, hid = jax.block_until_ready((outs, hid))
    outs_ref, hid_ref = rnn_sequence_ref(xs, h0, w_i2h, b_i2h, w_i2o, b_i2o)
    assert outs.shape == (seq_len, batch, output_size)
    assert hid.shape == (batch, hidden_size)
    assert jnp.allclose(outs, outs_ref, atol=1e-4, rtol=1e-4)
    assert jnp.allclose(hid, hid_ref, atol=1e-4, rtol=1e-4)

    print("KERNEL_OK")
</pallas_src>

<mosaic_0001>
module attributes {stable_mosaic.version = 11 : i64} {
  func.func @rnn_step_kernel(%arg0: i32, %arg1: memref<1x8x16xf32, #tpu.memory_space<vmem>>, %arg2: memref<8x128xf32, #tpu.memory_space<vmem>>, %arg3: memref<16x128xf32, #tpu.memory_space<vmem>>, %arg4: memref<128x128xf32, #tpu.memory_space<vmem>>, %arg5: memref<1x128xf32, #tpu.memory_space<vmem>>, %arg6: memref<1x8x128xf32, #tpu.memory_space<vmem>>, %arg7: memref<8x128xf32, #tpu.memory_space<vmem>>) attributes {dimension_semantics = [#tpu.dimension_semantics<arbitrary>], iteration_bounds = array<i64: 1>, scalar_prefetch = 0 : i64, scratch_operands = 1 : i64, tpu.core_type = #tpu.core_type<tc>, window_params = [{transform_indices = @transform_0, window_bounds = array<i64: 1, 8, 16>}, {pipeline_mode = #tpu.pipeline_mode<synchronous>, transform_indices = @transform_1, window_bounds = array<i64: 8, 128>}, {pipeline_mode = #tpu.pipeline_mode<synchronous>, transform_indices = @transform_2, window_bounds = array<i64: 16, 128>}, {pipeline_mode = #tpu.pipeline_mode<synchronous>, transform_indices = @transform_3, window_bounds = array<i64: 128, 128>}, {pipeline_mode = #tpu.pipeline_mode<synchronous>, transform_indices = @transform_4, window_bounds = array<i64: 1, 128>}, {transform_indices = @transform_5, window_bounds = array<i64: 1, 8, 128>}]} {
    %c0_i32 = arith.constant 0 : i32
    %0 = arith.cmpi eq, %arg0, %c0_i32 : i32
    %1 = arith.extui %0 : i1 to i32
    %c0_i32_0 = arith.constant 0 : i32
    %2 = arith.cmpi ne, %1, %c0_i32_0 : i32
    scf.if %2 {
      %c0_20 = arith.constant 0 : index
      %c0_21 = arith.constant 0 : index
      %38 = vector.load %arg2[%c0_20, %c0_21] : memref<8x128xf32, #tpu.memory_space<vmem>>, vector<8x128xf32>
      %c0_22 = arith.constant 0 : index
      %c0_23 = arith.constant 0 : index
      %39 = vector.load %arg7[%c0_22, %c0_23] : memref<8x128xf32, #tpu.memory_space<vmem>>, vector<8x128xf32>
      tpu.vector_store %arg7[%c0_22, %c0_23], %38 {strides = array<i32>} : memref<8x128xf32, #tpu.memory_space<vmem>>, vector<8x128xf32>,
    } else {
    }
    %c0 = arith.constant 0 : index
    %c0_1 = arith.constant 0 : index
    %c0_2 = arith.constant 0 : index
    %3 = vector.load %arg1[%c0, %c0_1, %c0_2] : memref<1x8x16xf32, #tpu.memory_space<vmem>>, vector<1x8x16xf32>
    %4 = vector.shape_cast %3 : vector<1x8x16xf32> to vector<8x16xf32>
    %c0_3 = arith.constant 0 : index
    %c0_4 = arith.constant 0 : index
    %5 = vector.load %arg3[%c0_3, %c0_4] : memref<16x128xf32, #tpu.memory_space<vmem>>, vector<16x128xf32>
    %cst = arith.constant dense<0.000000e+00> : vector<8x128xf32>
    %6 = tpu.matmul %4, %5, %cst {dimension_numbers = #tpu.dot_dimension_numbers<[1], [0], [0], [1], [0, 0, 1, 1], [], []>} : vector<8x16xf32>, vector<16x128xf32>, vector<8x128xf32> -> vector<8x128xf32>
    %c0_5 = arith.constant 0 : index
    %c0_6 = arith.constant 0 : index
    %7 = vector.load %arg7[%c0_5, %c0_6] : memref<8x128xf32, #tpu.memory_space<vmem>>, vector<8x128xf32>
    %c0_7 = arith.constant 0 : index
    %c0_8 = arith.constant 0 : index
    %8 = vector.load %arg4[%c0_7, %c0_8] : memref<128x128xf32, #tpu.memory_space<vmem>>, vector<128x128xf32>
    %cst_9 = arith.constant dense<0.000000e+00> : vector<8x128xf32>
    %9 = tpu.matmul %7, %8, %cst_9 {dimension_numbers = #tpu.dot_dimension_numbers<[1], [0], [0], [1], [0, 0, 1, 1], [], []>} : vector<8x128xf32>, vector<128x128xf32>, vector<8x128xf32> -> vector<8x128xf32>
    %10 = arith.addf %6, %9 : vector<8x128xf32>
    %c0_10 = arith.constant 0 : index
    %c0_11 = arith.constant 0 : index
    %11 = vector.load %arg5[%c0_10, %c0_11] : memref<1x128xf32, #tpu.memory_space<vmem>>, vector<1x128xf32>
    %12 = vector.broadcast %11 : vector<1x128xf32> to vector<8x128xf32>
    %13 = arith.addf %10, %12 : vector<8x128xf32>
    %14 = tpu.iota {dimensions = array<i32: 1>} : vector<8x128xi32>
    %c32_i32 = arith.constant 32 : i32
    %15 = vector.broadcast %c32_i32 : i32 to vector<8x128xi32>
    %16 = arith.cmpi sge, %14, %15 : vector<8x128xi32>
    %c40_i32 = arith.constant 40 : i32
    %17 = vector.broadcast %c40_i32 : i32 to vector<8x128xi32>
    %18 = arith.cmpi slt, %14, %17 : vector<8x128xi32>
    %19 = arith.andi %16, %18 : vector<8x128xi1>
    %cst_12 = arith.constant 0xFF800000 : f32
    %20 = vector.broadcast %cst_12 : f32 to vector<8x128xf32>
    %21 = arith.select %19, %13, %20 : vector<8x128xi1>, vector<8x128xf32>
    %cst_13 = arith.constant dense<0xFF800000> : vector<8xf32>
    %22 = vector.multi_reduction <maximumf>, %21, %cst_13 [1] : vector<8x128xf32> to vector<8xf32>
    %23 = vector.shape_cast %22 : vector<8xf32> to vector<8x1xf32>
    %24 = vector.broadcast %23 : vector<8x1xf32> to vector<8x128xf32>
    %25 = arith.subf %21, %24 : vector<8x128xf32>
    %26 = math.exp %25 : vector<8x128xf32>
    %cst_14 = arith.constant dense<0.000000e+00> : vector<8xf32>
    %27 = vector.multi_reduction <add>, %26, %cst_14 [1] : vector<8x128xf32> to vector<8xf32>
    %28 = vector.shape_cast %27 : vector<8xf32> to vector<8x1xf32>
    %29 = math.log %28 : vector<8x1xf32>
    %30 = arith.addf %23, %29 : vector<8x1xf32>
    %31 = vector.broadcast %30 : vector<8x1xf32> to vector<8x128xf32>
    %32 = arith.subf %13, %31 : vector<8x128xf32>
    %33 = arith.select %19, %32, %13 : vector<8x128xi1>, vector<8x128xf32>
    %c0_15 = arith.constant 0 : index
    %c0_16 = arith.constant 0 : index
    %c0_17 = arith.constant 0 : index
    %34 = vector.load %arg6[%c0_15, %c0_16, %c0_17] : memref<1x8x128xf32, #tpu.memory_space<vmem>>, vector<1x8x128xf32>
    %35 = vector.shape_cast %34 : vector<1x8x128xf32> to vector<8x128xf32>
    %36 = vector.shape_cast %33 : vector<8x128xf32> to vector<1x8x128xf32>
    tpu.vector_store %arg6[%c0_15, %c0_16, %c0_17], %36 {strides = array<i32>} : memref<1x8x128xf32, #tpu.memory_space<vmem>>, vector<1x8x128xf32>,
    %c0_18 = arith.constant 0 : index
    %c0_19 = arith.constant 0 : index
    %37 = vector.load %arg7[%c0_18, %c0_19] : memref<8x128xf32, #tpu.memory_space<vmem>>, vector<8x128xf32>
    tpu.vector_store %arg7[%c0_18, %c0_19], %33 {strides = array<i32>} : memref<8x128xf32, #tpu.memory_space<vmem>>, vector<8x128xf32>,
    return
  }
  func.func @transform_0(%arg0: i32) -> (i32, i32, i32) {
    %c0_i32 = arith.constant 0 : i32
    %c0_i32_0 = arith.constant 0 : i32
    %c0_i32_1 = arith.constant 0 : i32
    return %arg0, %c0_i32, %c0_i32_0 : i32, i32, i32
  }
  func.func @transform_1(%arg0: i32) -> (i32, i32) {
    %c0_i32 = arith.constant 0 : i32
    %c0_i32_0 = arith.constant 0 : i32
    %c0_i32_1 = arith.constant 0 : i32
    return %c0_i32, %c0_i32_0 : i32, i32
  }
  func.func @transform_2(%arg0: i32) -> (i32, i32) {
    %c0_i32 = arith.constant 0 : i32
    %c0_i32_0 = arith.constant 0 : i32
    %c0_i32_1 = arith.constant 0 : i32
    return %c0_i32, %c0_i32_0 : i32, i32
  }
  func.func @transform_3(%arg0: i32) -> (i32, i32) {
    %c0_i32 = arith.constant 0 : i32
    %c0_i32_0 = arith.constant 0 : i32
    %c0_i32_1 = arith.constant 0 : i32
    return %c0_i32, %c0_i32_0 : i32, i32
  }
  func.func @transform_4(%arg0: i32) -> (i32, i32) {
    %c0_i32 = arith.constant 0 : i32
    %c0_i32_0 = arith.constant 0 : i32
    %c0_i32_1 = arith.constant 0 : i32
    return %c0_i32, %c0_i32_0 : i32, i32
  }
  func.func @transform_5(%arg0: i32) -> (i32, i32, i32) {
    %c0_i32 = arith.constant 0 : i32
    %c0_i32_0 = arith.constant 0 : i32
    %c0_i32_1 = arith.constant 0 : i32
    return %arg0, %c0_i32, %c0_i32_0 : i32, i32, i32
  }
}

</mosaic_0001>

<llo_original>
// kernel: tpu_custom_call.1
$region0: #{tpu_custom_call.1}
  #allocation0 [shape = 'u32[]', space=smem, size = 0x4, offset = 0x4, fixed_abs, tag = 'smem constant byte address 0x4 - core index']
  #allocation1 [shape = 'u32[144,128]{1,0:T(1,128)}', space=vmem, size = 0x12000, scoped, tag = 'internal scratch']
  #allocation2 [shape = 'f32[8,128]{1,0:T(8,128)}', space=vmem, size = 0x1000, scoped, tag = 'scratch operand']
  %s0 = inlined_call_operand.hbm [shape: f32[1,8,16], index: 0, kind: input, shape index: {}]
  %s1 = inlined_call_operand.hbm [shape: f32[8,128], index: 1, kind: input, shape index: {}]
  %s2 = inlined_call_operand.hbm [shape: f32[16,128], index: 2, kind: input, shape index: {}]
  %s3 = inlined_call_operand.hbm [shape: f32[128,128], index: 3, kind: input, shape index: {}]
  %s4 = inlined_call_operand.vmem [shape: f32[1,128], index: 4, kind: input, shape index: {}]
  %s5 = inlined_call_operand.hbm [shape: f32[1,8,128], index: 5, kind: output, shape index: {}]
  %s6 = sld [smem:[#allocation0]]
  $region50: #{tpu_custom_call.1} parent=0
    _
  %s8 = ssub.s32 1, %s6
  %s9 = scalar_select 0, %s8, %s6
  $region1: #{tpu_custom_call.1} parent=0
    #allocation3 [shape = 'u8[4096]{0}', space=vmem, size = 0x1000, scoped, tag = 'input window, operand 0, single buffered']
    #allocation4 [shape = 's32[1]{0}', space=sflag, size = 0x4, scoped, tag = 'scoped memory for tpu_custom_call.1']
    #allocation5 [shape = 's32[1]{0}', space=sflag, size = 0x4, scoped, tag = 'scoped memory for tpu_custom_call.1']
    #allocation6 [shape = 'u8[4096]{0}', space=vmem, size = 0x1000, scoped, tag = 'input window, operand 1, single buffered']
    #allocation7 [shape = 's32[1]{0}', space=sflag, size = 0x4, scoped, tag = 'scoped memory for tpu_custom_call.1']
    #allocation8 [shape = 'u8[8192]{0}', space=vmem, size = 0x2000, scoped, tag = 'input window, operand 2, single buffered']
    #allocation9 [shape = 'u8[65536]{0}', space=vmem, size = 0x10000, scoped, tag = 'input window, operand 3, single buffered']
    #allocation10 [shape = 's32[1]{0}', space=sflag, size = 0x4, scoped, tag = 'scoped memory for tpu_custom_call.1']
    #allocation11 [shape = 'u8[4096]{0}', space=vmem, size = 0x1000, scoped, tag = 'output window, operand 0, single buffered']
    %10 = vsyncpa [#allocation4], 0
    %11 = vsyncpa [#allocation7], 0
    %12 = vsyncpa [#allocation10], 0
    %13 = vsyncpa [#allocation5], 0
    // Predicated region
    $region2: #{tpu_custom_call.1} parent=1 // pred_check
      _
    $region3: #{tpu_custom_call.1} parent=1 // pred_check_branch
      %15 = sbr.rel (0) target = $region5
    $region4: #{tpu_custom_call.1} parent=1 // pred_region
      %s17 = ssub.s32 128, 128
      %18 = vsyncadd [#allocation4], %s17
      %s20 = sshll.u32 [#allocation3], 4
      %s21 = int_to_ptr.vmem [resolvable:$true] %s20
      %23 = dma.hbm_to_vmem [thread:$0]  %s0, 128, %s21, [#allocation4]
    $region5: #{tpu_custom_call.1} parent=1 // pred_fallthru
      _
    // Predicated region
    $region6: #{tpu_custom_call.1} parent=1 // pred_check
      _
    $region7: #{tpu_custom_call.1} parent=1 // pred_check_branch
      %25 = sbr.rel (0) target = $region9
    $region8: #{tpu_custom_call.1} parent=1 // pred_region
      %s27 = ssub.s32 128, 128
      %28 = vsyncadd [#allocation7], %s27
      %s30 = sshll.u32 [#allocation6], 4
      %s31 = int_to_ptr.vmem [resolvable:$true] %s30
      %33 = dma.hbm_to_vmem [thread:$0]  %s1, 128, %s31, [#allocation7]
    $region9: #{tpu_custom_call.1} parent=1 // pred_fallthru
      _
    // Predicated region
    $region10: #{tpu_custom_call.1} parent=1 // pred_check
      _
    $region11: #{tpu_custom_call.1} parent=1 // pred_check_branch
      %35 = sbr.rel (0) target = $region13
    $region12: #{tpu_custom_call.1} parent=1 // pred_region
      %s37 = ssub.s32 256, 256
      %38 = vsyncadd [#allocation7], %s37
      %s39 = sshll.u32 [#allocation8], 4
      %s40 = int_to_ptr.vmem [resolvable:$true] %s39
      %45 = dma.hbm_to_vmem [thread:$0]  %s2, 256, %s40, [#allocation7], 128, 128, 8
    $region13: #{tpu_custom_call.1} parent=1 // pred_fallthru
      _
    // Predicated region
    $region14: #{tpu_custom_call.1} parent=1 // pred_check
      _
    $region15: #{tpu_custom_call.1} parent=1 // pred_check_branch
      %47 = sbr.rel (0) target = $region17
    $region16: #{tpu_custom_call.1} parent=1 // pred_region
      %s49 = ssub.s32 2048, 2048
      %50 = vsyncadd [#allocation10], %s49
      %s51 = sshll.u32 [#allocation9], 4
      %s52 = int_to_ptr.vmem [resolvable:$true] %s51
      %57 = dma.hbm_to_vmem [thread:$0]  %s3, 2048, %s52, [#allocation10], 128, 128, 8
    $region17: #{tpu_custom_call.1} parent=1 // pred_fallthru
      _
    // Predicated region
    $region18: #{tpu_custom_call.1} parent=1 // pred_check
      _
    $region19: #{tpu_custom_call.1} parent=1 // pred_check_branch
      %59 = sbr.rel (0) target = $region21
    $region20: #{tpu_custom_call.1} parent=1 // pred_region
      _
    $region21: #{tpu_custom_call.1} parent=1 // pred_fallthru
      _
    // Predicated region
    $region22: #{tpu_custom_call.1} parent=1 // pred_check
      _
    $region23: #{tpu_custom_call.1} parent=1 // pred_check_branch
      %61 = sbr.rel (0) target = $region25
    $region24: #{tpu_custom_call.1} parent=1 // pred_region
      %62 = dma.done [#allocation4], 128
    $region25: #{tpu_custom_call.1} parent=1 // pred_fallthru
      _
    // Predicated region
    $region26: #{tpu_custom_call.1} parent=1 // pred_check
      _
    $region27: #{tpu_custom_call.1} parent=1 // pred_check_branch
      %64 = sbr.rel (0) target = $region29
    $region28: #{tpu_custom_call.1} parent=1 // pred_region
      %65 = dma.done [#allocation7], 128
    $region29: #{tpu_custom_call.1} parent=1 // pred_fallthru
      _
    // Predicated region
    $region30: #{tpu_custom_call.1} parent=1 // pred_check
      _
    $region31: #{tpu_custom_call.1} parent=1 // pred_check_branch
      %67 = sbr.rel (0) target = $region33
    $region32: #{tpu_custom_call.1} parent=1 // pred_region
      %68 = dma.done [#allocation7], 256
    $region33: #{tpu_custom_call.1} parent=1 // pred_fallthru
      _
    // Predicated region
    $region34: #{tpu_custom_call.1} parent=1 // pred_check
      _
    $region35: #{tpu_custom_call.1} parent=1 // pred_check_branch
      %70 = sbr.rel (0) target = $region37
    $region36: #{tpu_custom_call.1} parent=1 // pred_region
      %71 = dma.done [#allocation10], 2048
    $region37: #{tpu_custom_call.1} parent=1 // pred_fallthru
      _
    %p72 = scmp.eq.s32.totalorder 0, 0
    // Predicated region
    $region38: #{tpu_custom_call.1} parent=1 // pred_check
      %p73 = pneg %p72
    $region39: #{tpu_custom_call.1} parent=1 // pred_check_branch
      %75 = sbr.rel (%p73) target = $region41
    $region40: #{tpu_custom_call.1} parent=1 // pred_region
      %v76 = vld [vmem:[#allocation6] sm:$0xff]
      %77 = vst [vmem:[#allocation2] sm:$0xff] %v76
    $region41: #{tpu_custom_call.1} parent=1 // pred_fallthru
      _
    %v78 = vld [vmem:[#allocation3] sm:$0xff]
    %v79 = vld [vmem:[#allocation8] sm:$0xff]
    %v80 = vld [vmem:[#allocation8 + $0x8] sm:$0xff]
    %v81 = vld [vmem:[#allocation2] sm:$0xff]
    %v82 = vld [vmem:[#allocation9] sm:$0xff]
    %v83 = vld [vmem:[#allocation9 + $0x8] sm:$0xff]
    %v84 = vld [vmem:[#allocation9 + $0x10] sm:$0xff]
    %v85 = vld [vmem:[#allocation9 + $0x18] sm:$0xff]
    %v86 = vld [vmem:[#allocation9 + $0x20] sm:$0xff]
    %v87 = vld [vmem:[#allocation9 + $0x28] sm:$0xff]
    %v88 = vld [vmem:[#allocation9 + $0x30] sm:$0xff]
    %v89 = vld [vmem:[#allocation9 + $0x38] sm:$0xff]
    %v90 = vld [vmem:[#allocation9 + $0x40] sm:$0xff]
    %v91 = vld [vmem:[#allocation9 + $0x48] sm:$0xff]
    %v92 = vld [vmem:[#allocation9 + $0x50] sm:$0xff]
    %v93 = vld [vmem:[#allocation9 + $0x58] sm:$0xff]
    %v94 = vld [vmem:[#allocation9 + $0x60] sm:$0xff]
    %v95 = vld [vmem:[#allocation9 + $0x68] sm:$0xff]
    %v96 = vld [vmem:[#allocation9 + $0x70] sm:$0xff]
    %v97 = vld [vmem:[#allocation9 + $0x78] sm:$0xff]
    %98 = vmatprep.subr.mxu0 0.0
    %99 = vmatpush1.msra.mxu0 %v82
    %100 = vmatprep.subr.mxu0 0.0
    %101 = vmatpush1.msra.mxu0 %v83
    %102 = vmatprep.subr.mxu0 0.0
    %103 = vmatpush1.msra.mxu0 %v84
    %104 = vmatprep.subr.mxu0 0.0
    %105 = vmatpush1.msra.mxu0 %v85
    %106 = vmatprep.subr.mxu0 0.0
    %107 = vmatpush1.msra.mxu0 %v86
    %108 = vmatprep.subr.mxu0 0.0
    %109 = vmatpush1.msra.mxu0 %v87
    %110 = vmatprep.subr.mxu0 0.0
    %111 = vmatpush1.msra.mxu0 %v88
    %112 = vmatprep.subr.mxu0 0.0
    %113 = vmatpush1.msra.mxu0 %v89
    %114 = vmatprep.subr.mxu0 0.0
    %115 = vmatpush1.msra.mxu0 %v90
    %116 = vmatprep.subr.mxu0 0.0
    %117 = vmatpush1.msra.mxu0 %v91
    %118 = vmatprep.subr.mxu0 0.0
    %119 = vmatpush1.msra.mxu0 %v92
    %120 = vmatprep.subr.mxu0 0.0
    %121 = vmatpush1.msra.mxu0 %v93
    %122 = vmatprep.subr.mxu0 0.0
    %123 = vmatpush1.msra.mxu0 %v94
    %124 = vmatprep.subr.mxu0 0.0
    %125 = vmatpush1.msra.mxu0 %v95
    %126 = vmatprep.subr.mxu0 0.0
    %127 = vmatpush1.msra.mxu0 %v96
    %128 = vmatprep.subr.mxu0 0.0
    %129 = vmatpush1.msra.mxu0 %v97
    %130 = vmatprep.subr.mxu0 0.0
    %131 = vmatpush1.msra.mxu0 0.0
    %132 = vmatprep.subr.mxu0 0.0
    %133 = vmatpush1.msra.mxu0 0.0
    %134 = vmatprep.subr.mxu0 0.0
    %135 = vmatpush1.msra.mxu0 0.0
    %136 = vmatprep.subr.mxu0 0.0
    %137 = vmatpush1.msra.mxu0 0.0
    %138 = vmatprep.subr.mxu0 0.0
    %139 = vmatpush1.msra.mxu0 0.0
    %140 = vmatprep.subr.mxu0 0.0
    %141 = vmatpush1.msra.mxu0 0.0
    %142 = vmatprep.subr.mxu0 0.0
    %143 = vmatpush1.msra.mxu0 0.0
    %144 = vmatprep.subr.mxu0 0.0
    %145 = vmatpush1.msra.mxu0 0.0
    %146 = vmatprep.subr.mxu0 0.0
    %147 = vmatpush1.msra.mxu0 0.0
    %148 = vmatprep.subr.mxu0 0.0
    %149 = vmatpush1.msra.mxu0 0.0
    %150 = vmatprep.subr.mxu0 0.0
    %151 = vmatpush1.msra.mxu0 0.0
    %152 = vmatprep.subr.mxu0 0.0
    %153 = vmatpush1.msra.mxu0 0.0
    %154 = vmatprep.subr.mxu0 0.0
    %155 = vmatpush1.msra.mxu0 0.0
    %156 = vmatprep.subr.mxu0 0.0
    %157 = vmatpush1.msra.mxu0 0.0
    %158 = vmatprep.subr.mxu0 0.0
    %159 = vmatpush1.msra.mxu0 0.0
    %160 = vmatprep.subr.mxu0 0.0
    %161 = vmatpush1.msra.mxu0 0.0
    %162 = vmatprep.mubr.f32.mxu0 0.0
    %163 = vmatmul.mubr.f32.gmra.mrb[0].mxu0 %v81
    %v164 = vpop.f32.mrb[0].mxu0
    %v165 = vadd.f32 0.0, %v164
    %v166 = vpop.f32.mrb[0].mxu0
    %167 = vdwg.mxu0
    %vm168 = vcmask 130048
    %v170 = vsel %vm168, %v78, 0
    %172 = vmatprep.subr.mxu0 0.0
    %173 = vmatpush1.msra.mxu0 %v79
    %174 = vmatprep.subr.mxu0 0.0
    %175 = vmatpush1.msra.mxu0 %v80
    %176 = vmatprep.subr.mxu0 0.0
    %177 = vmatpush1.msra.mxu0 0.0
    %178 = vmatprep.subr.mxu0 0.0
    %179 = vmatpush1.msra.mxu0 0.0
    %180 = vmatprep.subr.mxu0 0.0
    %181 = vmatpush1.msra.mxu0 0.0
    %182 = vmatprep.subr.mxu0 0.0
    %183 = vmatpush1.msra.mxu0 0.0
    %184 = vmatprep.subr.mxu0 0.0
    %185 = vmatpush1.msra.mxu0 0.0
    %186 = vmatprep.subr.mxu0 0.0
    %187 = vmatpush1.msra.mxu0 0.0
    %188 = vmatprep.subr.mxu0 0.0
    %189 = vmatpush1.msra.mxu0 0.0
    %190 = vmatprep.subr.mxu0 0.0
    %191 = vmatpush1.msra.mxu0 0.0
    %192 = vmatprep.subr.mxu0 0.0
    %193 = vmatpush1.msra.mxu0 0.0
    %194 = vmatprep.subr.mxu0 0.0
    %195 = vmatpush1.msra.mxu0 0.0
    %196 = vmatprep.subr.mxu0 0.0
    %197 = vmatpush1.msra.mxu0 0.0
    %198 = vmatprep.subr.mxu0 0.0
    %199 = vmatpush1.msra.mxu0 0.0
    %200 = vmatprep.subr.mxu0 0.0
    %201 = vmatpush1.msra.mxu0 0.0
    %202 = vmatprep.subr.mxu0 0.0
    %203 = vmatpush1.msra.mxu0 0.0
    %204 = vmatprep.subr.mxu0 0.0
    %205 = vmatpush1.msra.mxu0 0.0
    %206 = vmatprep.subr.mxu0 0.0
    %207 = vmatpush1.msra.mxu0 0.0
    %208 = vmatprep.subr.mxu0 0.0
    %209 = vmatpush1.msra.mxu0 0.0
    %210 = vmatprep.subr.mxu0 0.0
    %211 = vmatpush1.msra.mxu0 0.0
    %212 = vmatprep.subr.mxu0 0.0
    %213 = vmatpush1.msra.mxu0 0.0
    %214 = vmatprep.subr.mxu0 0.0
    %215 = vmatpush1.msra.mxu0 0.0
    %216 = vmatprep.subr.mxu0 0.0
    %217 = vmatpush1.msra.mxu0 0.0
    %218 = vmatprep.subr.mxu0 0.0
    %219 = vmatpush1.msra.mxu0 0.0
    %220 = vmatprep.subr.mxu0 0.0
    %221 = vmatpush1.msra.mxu0 0.0
    %222 = vmatprep.subr.mxu0 0.0
    %223 = vmatpush1.msra.mxu0 0.0
    %224 = vmatprep.subr.mxu0 0.0
    %225 = vmatpush1.msra.mxu0 0.0
    %226 = vmatprep.subr.mxu0 0.0
    %227 = vmatpush1.msra.mxu0 0.0
    %228 = vmatprep.subr.mxu0 0.0
    %229 = vmatpush1.msra.mxu0 0.0
    %230 = vmatprep.subr.mxu0 0.0
    %231 = vmatpush1.msra.mxu0 0.0
    %232 = vmatprep.subr.mxu0 0.0
    %233 = vmatpush1.msra.mxu0 0.0
    %234 = vmatprep.subr.mxu0 0.0
    %235 = vmatpush1.msra.mxu0 0.0
    %236 = vmatprep.mubr.f32.mxu0 0.0
    %237 = vmatmul.mubr.f32.gmra.mrb[0].mxu0 %v170
    %v238 = vpop.f32.mrb[0].mxu0
    %v239 = vadd.f32 %v165, %v238
    %v240 = vpop.f32.mrb[0].mxu0
    %241 = vdwg.mxu0
    %v242 = vld [vmem:[%s4] sm:$0x1]
    %v244 = vlaneseq
    %v245 = vshrl.u32 %v244, 7
    %v246 = vsub.s32 0, %v245
    %v247 = vrot.slane %v242, %v246
    %v249 = vadd.f32 %v239, %v247
    %v250 = vlaneseq
    %v251 = vand.u32 %v250, 127
    %vm252 = vcmp.ge.s32.totalorder %v251, 32
    %vm253 = vcmp.lt.s32.totalorder %v251, 40
    %vm254 = vmand %vm252, %vm253
    %v255 = vsel %vm254, %v249, -inf
    %256 = vmax.xlane.f32.xlu0 %v255
    %v257 = vpop.xlane.xlu0 %256
    %v258 = vsub.f32 %v255, %v257
    %v259 = vmul.f32 %v258, 1.442695
    %v260 = vpow.pop %v259
    %261 = vadd.xlane.f32.xlu0 %v260
    %v262 = vpop.xlane.xlu0 %261
    %v263 = vlog2.pop %v262
    %v264 = vmul.f32 %v263, 0.6931472
    %v265 = vadd.f32 %v257, %v264
    %v266 = vsub.f32 %v249, %v265
    %v267 = vsel %vm254, %v266, %v249
    %268 = vst [vmem:[#allocation11] sm:$0xff] %v267
    %269 = vst [vmem:[#allocation2] sm:$0xff] %v267
    // Predicated region
    $region42: #{tpu_custom_call.1} parent=1 // pred_check
      _
    $region43: #{tpu_custom_call.1} parent=1 // pred_check_branch
      %271 = sbr.rel (0) target = $region45
    $region44: #{tpu_custom_call.1} parent=1 // pred_region
      %s273 = ssub.s32 128, 128
      %274 = vsyncadd [#allocation5], %s273
      %s276 = sshll.u32 [#allocation11], 4
      %s277 = int_to_ptr.vmem [resolvable:$true] %s276
      %279 = dma.vmem_to_hbm [thread:$0]  %s277, 128, %s5, [#allocation5]
    $region45: #{tpu_custom_call.1} parent=1 // pred_fallthru
      _
    // Predicated region
    $region46: #{tpu_custom_call.1} parent=1 // pred_check
      _
    $region47: #{tpu_custom_call.1} parent=1 // pred_check_branch
      %281 = sbr.rel (0) target = $region49
    $region48: #{tpu_custom_call.1} parent=1 // pred_region
      %282 = dma.done [#allocation5], 128
    $region49: #{tpu_custom_call.1} parent=1 // pred_fallthru
      _
    %283 = vsyncpa [#allocation4], 1
    %284 = vsyncpa [#allocation7], 1
    %285 = vsyncpa [#allocation10], 1
    %286 = vsyncpa [#allocation5], 1

</llo_original>
